<compile_context>
chip_gen: v7x
topology: tpu7x:2x2x1
jax: 0.10.0
libtpu: 0.0.40
codegen_flags: <defaults>
</compile_context>

<pallas_src>
import functools

import jax
import jax.numpy as jnp
from jax.experimental import pallas as pl
from jax.experimental.pallas import tpu as pltpu

_HIDDEN = 256


def _round_up(x, m):
    return -(-x // m) * m


def _edge_placement_kernel(
    obs_ref,          # [TB, D]  f32 (cast to matmul dtype in-kernel)
    w1_ref, b1_ref,   # [D, H] compute dtype, [1, H] f32
    w2_ref, b2_ref,   # [H, H] compute dtype, [1, H] f32
    wh_ref, bh_ref,   # [H, N] compute dtype, [1, N] f32  (fused policy+value head, N % 128 == 0)
    out_ref,          # [TB, N] compute dtype, lane-dense: [:, :A] logits, [:, A] value
):
    # In-kernel operand cast (rides the VPU slot, hidden under the MXU work)
    # instead of a separate wrapper-side XLA cast pass over obs in HBM.
    x = obs_ref[...].astype(w1_ref.dtype)

    # shared_net layer 1: Linear + ReLU (MXU matmul, f32 accumulate, f32 bias/ReLU)
    h1 = jnp.dot(x, w1_ref[...], preferred_element_type=jnp.float32) + b1_ref[...]
    h1 = jnp.maximum(h1, 0.0)

    # shared_net layer 2: Linear + ReLU (cast operand into the dot, keep activation f32)
    h2 = jnp.dot(h1.astype(w2_ref.dtype), w2_ref[...],
                 preferred_element_type=jnp.float32) + b2_ref[...]
    h2 = jnp.maximum(h2, 0.0)

    # fused policy + value head -> single lane-dense store in the compute dtype
    y = jnp.dot(h2.astype(wh_ref.dtype), wh_ref[...],
                preferred_element_type=jnp.float32) + bh_ref[...]
    out_ref[...] = y.astype(out_ref.dtype)


def prepare_params(params, compute_dtype=jnp.bfloat16):
    """One-time parameter preprocessing, hoisted out of the per-call forward.

    Fuses policy + value heads into one [H, A+1] matrix, pads it to a multiple of
    128 lanes (lane-dense unmasked stores), and casts weights to the compute dtype
    (bf16 default on all generations) while keeping biases f32.

    Note: with bf16 compute the value head is also stored in bf16 in the output
    slab (~3 significant digits). If downstream value targets are sensitive, use
    compute_dtype=jnp.float32.
    """
    head_w = jnp.concatenate([params["wp"], params["wv"]], axis=1)   # [H, A+1]
    head_b = jnp.concatenate([params["bp"], params["bv"]], axis=1)   # [1, A+1]
    n_head = head_w.shape[1]
    lane_pad = (-n_head) % 128
    if lane_pad:
        head_w = jnp.pad(head_w, ((0, 0), (0, lane_pad)))
        head_b = jnp.pad(head_b, ((0, 0), (0, lane_pad)))
    return {
        "w1": params["w1"].astype(compute_dtype),
        "b1": params["b1"].astype(jnp.float32),
        "w2": params["w2"].astype(compute_dtype),
        "b2": params["b2"].astype(jnp.float32),
        "wh": head_w.astype(compute_dtype),
        "bh": head_b.astype(jnp.float32),
    }


@functools.partial(jax.jit, static_argnames=("num_outputs", "block_b"))
def edge_placement_forward(obs, prepared, num_outputs, *, block_b=1024):
    """Fused forward pass. Returns (logits [B, A] compute-dtype, value [B] f32)."""
    B, D = obs.shape
    H = prepared["w1"].shape[1]
    N = prepared["wh"].shape[1]          # fused-head width, multiple of 128
    A = num_outputs
    compute_dtype = prepared["w1"].dtype
    itemsize = jnp.dtype(compute_dtype).itemsize

    # ---- batch tiling ------------------------------------------------------
    # Sublane alignment: 16 rows for sub-32-bit output tiles, 8 for f32.
    sub = 16 if itemsize < 4 else 8
    if B > 256:
        # Force >= 2 grid steps so v7x's two TensorCores both get work
        # (harmless single-TC loop on v5e/v6e). Cap at block_b (VMEM budget was
        # derived against v7x's 64 MiB physical VMEM: tb=1024 -> ~3-4 MiB).
        tb = min(block_b, _round_up(-(-B // 2), sub))
    else:
        tb = max(sub, _round_up(B, sub))
    Bp = _round_up(B, tb)
    obs_p = obs if Bp == B else jnp.pad(obs, ((0, Bp - B), (0, 0)))
    grid = (Bp // tb,)

    # ---- scheduler hints ---------------------------------------------------
    flops = 2 * Bp * (D * H + H * H + H * N)
    bytes_accessed = (
        Bp * D * 4                                  # obs stays f32 (cast in-kernel)
        + (D * H + H * H + H * N) * itemsize        # weights
        + (2 * H + N) * 4                           # f32 biases
        + Bp * N * itemsize                         # compute-dtype output slab
    )

    batch_blk = lambda n: pl.BlockSpec((tb, n), lambda i: (i, 0))
    # Constant index_map -> weights/biases stay VMEM-resident across grid steps
    # while obs/out DMA is pipelined over the batch.
    resident = lambda shape: pl.BlockSpec(shape, lambda i: (0, 0))

    out_slab = pl.pallas_call(
        _edge_placement_kernel,
        out_shape=jax.ShapeDtypeStruct((Bp, N), compute_dtype),
        grid=grid,
        in_specs=[
            batch_blk(D),                # obs, pipelined over the batch grid
            resident((D, H)), resident((1, H)),
            resident((H, H)), resident((1, H)),
            resident((H, N)), resident((1, N)),
        ],
        out_specs=batch_blk(N),
        compiler_params=pltpu.CompilerParams(
            dimension_semantics=("parallel",),       # shard batch over v7x's 2 TCs
            vmem_limit_bytes=32 * 1024 * 1024,       # ample headroom, fits v7x's 64 MiB
        ),
        cost_estimate=pl.CostEstimate(
            flops=flops, transcendentals=0, bytes_accessed=bytes_accessed
        ),
    )(obs_p, prepared["w1"], prepared["b1"], prepared["w2"], prepared["b2"],
      prepared["wh"], prepared["bh"])

    logits = out_slab[:B, :A]
    value = out_slab[:B, A].astype(jnp.float32)
    return logits, value


def init_params(key, obs_dim, num_outputs, hidden=_HIDDEN):
    """Deterministic synthetic parameters (shapes match the PyTorch module)."""
    ks = jax.random.split(key, 8)
    scale = 0.05
    return {
        "w1": scale * jax.random.normal(ks[0], (obs_dim, hidden), jnp.float32),
        "b1": scale * jax.random.normal(ks[1], (1, hidden), jnp.float32),
        "w2": scale * jax.random.normal(ks[2], (hidden, hidden), jnp.float32),
        "b2": scale * jax.random.normal(ks[3], (1, hidden), jnp.float32),
        "wp": scale * jax.random.normal(ks[4], (hidden, num_outputs), jnp.float32),
        "bp": scale * jax.random.normal(ks[5], (1, num_outputs), jnp.float32),
        "wv": scale * jax.random.normal(ks[6], (hidden, 1), jnp.float32),
        "bv": scale * jax.random.normal(ks[7], (1, 1), jnp.float32),
    }


def _reference_forward(obs, p):
    h1 = jnp.maximum(obs @ p["w1"] + p["b1"], 0.0)
    h2 = jnp.maximum(h1 @ p["w2"] + p["b2"], 0.0)
    logits = h2 @ p["wp"] + p["bp"]
    value = (h2 @ p["wv"] + p["bv"])[:, 0]
    return logits, value


if __name__ == "__main__":
    key = jax.random.PRNGKey(0)
    k_obs, k_params = jax.random.split(key)

    batch = 8
    obs_dim = 32
    num_outputs = 16

    obs = jax.random.normal(k_obs, (batch, obs_dim), jnp.float32)
    params = init_params(k_params, obs_dim, num_outputs)
    ref_logits, ref_value = _reference_forward(obs, params)

    # f32 path: bit-faithful to the PyTorch module semantics.
    prep_f32 = prepare_params(params, compute_dtype=jnp.float32)
    logits, value = edge_placement_forward(obs, prep_f32, num_outputs)
    jax.block_until_ready((logits, value))
    assert logits.shape == (batch, num_outputs)
    assert value.shape == (batch,)
    assert jnp.allclose(logits, ref_logits, atol=1e-4, rtol=1e-4)
    assert jnp.allclose(value, ref_value, atol=1e-4, rtol=1e-4)

    # bf16 operand/output path (default perf mode on v5e/v6e/v7x): f32 accumulation.
    prep_bf16 = prepare_params(params)   # compute_dtype=bfloat16
    logits_bf, value_bf = edge_placement_forward(obs, prep_bf16, num_outputs)
    jax.block_until_ready((logits_bf, value_bf))
    assert jnp.allclose(logits_bf.astype(jnp.float32), ref_logits, atol=5e-2, rtol=5e-2)
    assert jnp.allclose(value_bf, ref_value, atol=5e-2, rtol=5e-2)

    # Exercise the multi-step batch grid / pipelined path (and the >=2-step v7x
    # split) with a non-multiple batch size.
    big_obs = jax.random.normal(jax.random.PRNGKey(1), (1000, obs_dim), jnp.float32)
    big_logits, big_value = edge_placement_forward(big_obs, prep_f32, num_outputs)
    jax.block_until_ready((big_logits, big_value))
    ref_bl, ref_bv = _reference_forward(big_obs, params)
    assert big_logits.shape == (1000, num_outputs) and big_value.shape == (1000,)
    assert jnp.allclose(big_logits, ref_bl, atol=1e-4, rtol=1e-4)
    assert jnp.allclose(big_value, ref_bv, atol=1e-4, rtol=1e-4)

    print("KERNEL_OK")
</pallas_src>

<mosaic_0001>
module attributes {stable_mosaic.version = 11 : i64} {
  func.func @_edge_placement_kernel(%arg0: i32, %arg1: memref<8x32xf32, #tpu.memory_space<vmem>>, %arg2: memref<32x256xf32, #tpu.memory_space<vmem>>, %arg3: memref<1x256xf32, #tpu.memory_space<vmem>>, %arg4: memref<256x256xf32, #tpu.memory_space<vmem>>, %arg5: memref<1x256xf32, #tpu.memory_space<vmem>>, %arg6: memref<256x128xf32, #tpu.memory_space<vmem>>, %arg7: memref<1x128xf32, #tpu.memory_space<vmem>>, %arg8: memref<8x128xf32, #tpu.memory_space<vmem>>) attributes {dimension_semantics = [#tpu.dimension_semantics<parallel>], iteration_bounds = array<i64: 1>, scalar_prefetch = 0 : i64, scratch_operands = 0 : i64, tpu.core_type = #tpu.core_type<tc>, window_params = [{transform_indices = @transform_0, window_bounds = array<i64: 8, 32>}, {pipeline_mode = #tpu.pipeline_mode<synchronous>, transform_indices = @transform_1, window_bounds = array<i64: 32, 256>}, {pipeline_mode = #tpu.pipeline_mode<synchronous>, transform_indices = @transform_2, window_bounds = array<i64: 1, 256>}, {pipeline_mode = #tpu.pipeline_mode<synchronous>, transform_indices = @transform_3, window_bounds = array<i64: 256, 256>}, {pipeline_mode = #tpu.pipeline_mode<synchronous>, transform_indices = @transform_4, window_bounds = array<i64: 1, 256>}, {pipeline_mode = #tpu.pipeline_mode<synchronous>, transform_indices = @transform_5, window_bounds = array<i64: 256, 128>}, {pipeline_mode = #tpu.pipeline_mode<synchronous>, transform_indices = @transform_6, window_bounds = array<i64: 1, 128>}, {transform_indices = @transform_7, window_bounds = array<i64: 8, 128>}]} {
    %c0 = arith.constant 0 : index
    %c0_0 = arith.constant 0 : index
    %0 = vector.load %arg1[%c0, %c0_0] : memref<8x32xf32, #tpu.memory_space<vmem>>, vector<8x32xf32>
    %c0_1 = arith.constant 0 : index
    %c0_2 = arith.constant 0 : index
    %1 = vector.load %arg2[%c0_1, %c0_2] : memref<32x256xf32, #tpu.memory_space<vmem>>, vector<32x256xf32>
    %cst = arith.constant dense<0.000000e+00> : vector<8x256xf32>
    %2 = tpu.matmul %0, %1, %cst {dimension_numbers = #tpu.dot_dimension_numbers<[1], [0], [0], [1], [0, 0, 1, 1], [], []>} : vector<8x32xf32>, vector<32x256xf32>, vector<8x256xf32> -> vector<8x256xf32>
    %c0_3 = arith.constant 0 : index
    %c0_4 = arith.constant 0 : index
    %3 = vector.load %arg3[%c0_3, %c0_4] : memref<1x256xf32, #tpu.memory_space<vmem>>, vector<1x256xf32>
    %4 = vector.broadcast %3 : vector<1x256xf32> to vector<8x256xf32>
    %5 = arith.addf %2, %4 : vector<8x256xf32>
    %cst_5 = arith.constant 0.000000e+00 : f32
    %6 = vector.broadcast %cst_5 : f32 to vector<8x256xf32>
    %7 = arith.maximumf %5, %6 : vector<8x256xf32>
    %c0_6 = arith.constant 0 : index
    %c0_7 = arith.constant 0 : index
    %8 = vector.load %arg4[%c0_6, %c0_7] : memref<256x256xf32, #tpu.memory_space<vmem>>, vector<256x256xf32>
    %cst_8 = arith.constant dense<0.000000e+00> : vector<8x256xf32>
    %9 = tpu.matmul %7, %8, %cst_8 {dimension_numbers = #tpu.dot_dimension_numbers<[1], [0], [0], [1], [0, 0, 1, 1], [], []>} : vector<8x256xf32>, vector<256x256xf32>, vector<8x256xf32> -> vector<8x256xf32>
    %c0_9 = arith.constant 0 : index
    %c0_10 = arith.constant 0 : index
    %10 = vector.load %arg5[%c0_9, %c0_10] : memref<1x256xf32, #tpu.memory_space<vmem>>, vector<1x256xf32>
    %11 = vector.broadcast %10 : vector<1x256xf32> to vector<8x256xf32>
    %12 = arith.addf %9, %11 : vector<8x256xf32>
    %cst_11 = arith.constant 0.000000e+00 : f32
    %13 = vector.broadcast %cst_11 : f32 to vector<8x256xf32>
    %14 = arith.maximumf %12, %13 : vector<8x256xf32>
    %c0_12 = arith.constant 0 : index
    %c0_13 = arith.constant 0 : index
    %15 = vector.load %arg6[%c0_12, %c0_13] : memref<256x128xf32, #tpu.memory_space<vmem>>, vector<256x128xf32>
    %cst_14 = arith.constant dense<0.000000e+00> : vector<8x128xf32>
    %16 = tpu.matmul %14, %15, %cst_14 {dimension_numbers = #tpu.dot_dimension_numbers<[1], [0], [0], [1], [0, 0, 1, 1], [], []>} : vector<8x256xf32>, vector<256x128xf32>, vector<8x128xf32> -> vector<8x128xf32>
    %c0_15 = arith.constant 0 : index
    %c0_16 = arith.constant 0 : index
    %17 = vector.load %arg7[%c0_15, %c0_16] : memref<1x128xf32, #tpu.memory_space<vmem>>, vector<1x128xf32>
    %18 = vector.broadcast %17 : vector<1x128xf32> to vector<8x128xf32>
    %19 = arith.addf %16, %18 : vector<8x128xf32>
    %c0_17 = arith.constant 0 : index
    %c0_18 = arith.constant 0 : index
    %20 = vector.load %arg8[%c0_17, %c0_18] : memref<8x128xf32, #tpu.memory_space<vmem>>, vector<8x128xf32>
    tpu.vector_store %arg8[%c0_17, %c0_18], %19 {strides = array<i32>} : memref<8x128xf32, #tpu.memory_space<vmem>>, vector<8x128xf32>,
    return
  }
  func.func @transform_0(%arg0: i32) -> (i32, i32) {
    %c0_i32 = arith.constant 0 : i32
    %c0_i32_0 = arith.constant 0 : i32
    return %arg0, %c0_i32 : i32, i32
  }
  func.func @transform_1(%arg0: i32) -> (i32, i32) {
    %c0_i32 = arith.constant 0 : i32
    %c0_i32_0 = arith.constant 0 : i32
    %c0_i32_1 = arith.constant 0 : i32
    return %c0_i32, %c0_i32_0 : i32, i32
  }
  func.func @transform_2(%arg0: i32) -> (i32, i32) {
    %c0_i32 = arith.constant 0 : i32
    %c0_i32_0 = arith.constant 0 : i32
    %c0_i32_1 = arith.constant 0 : i32
    return %c0_i32, %c0_i32_0 : i32, i32
  }
  func.func @transform_3(%arg0: i32) -> (i32, i32) {
    %c0_i32 = arith.constant 0 : i32
    %c0_i32_0 = arith.constant 0 : i32
    %c0_i32_1 = arith.constant 0 : i32
    return %c0_i32, %c0_i32_0 : i32, i32
  }
  func.func @transform_4(%arg0: i32) -> (i32, i32) {
    %c0_i32 = arith.constant 0 : i32
    %c0_i32_0 = arith.constant 0 : i32
    %c0_i32_1 = arith.constant 0 : i32
    return %c0_i32, %c0_i32_0 : i32, i32
  }
  func.func @transform_5(%arg0: i32) -> (i32, i32) {
    %c0_i32 = arith.constant 0 : i32
    %c0_i32_0 = arith.constant 0 : i32
    %c0_i32_1 = arith.constant 0 : i32
    return %c0_i32, %c0_i32_0 : i32, i32
  }
  func.func @transform_6(%arg0: i32) -> (i32, i32) {
    %c0_i32 = arith.constant 0 : i32
    %c0_i32_0 = arith.constant 0 : i32
    %c0_i32_1 = arith.constant 0 : i32
    return %c0_i32, %c0_i32_0 : i32, i32
  }
  func.func @transform_7(%arg0: i32) -> (i32, i32) {
    %c0_i32 = arith.constant 0 : i32
    %c0_i32_0 = arith.constant 0 : i32
    return %arg0, %c0_i32 : i32, i32
  }
}

</mosaic_0001>

<llo_original>
// kernel: edge_placement_forward.1
$region0: #{edge_placement_forward.1}
  #allocation0 [shape = 'u32[]', space=smem, size = 0x4, offset = 0x4, fixed_abs, tag = 'smem constant byte address 0x4 - core index']
  #allocation1 [shape = 'u32[144,128]{1,0:T(1,128)}', space=vmem, size = 0x12000, scoped, tag = 'internal scratch']
  %s0 = inlined_call_operand.hbm [shape: f32[8,32], index: 0, kind: input, shape index: {}]
  %s1 = inlined_call_operand.hbm [shape: f32[32,256], index: 1, kind: input, shape index: {}]
  %s2 = inlined_call_operand.vmem [shape: f32[1,256], index: 2, kind: input, shape index: {}]
  %s3 = inlined_call_operand.hbm [shape: f32[256,256], index: 3, kind: input, shape index: {}]
  %s4 = inlined_call_operand.vmem [shape: f32[1,256], index: 4, kind: input, shape index: {}]
  %s5 = inlined_call_operand.hbm [shape: f32[256,128], index: 5, kind: input, shape index: {}]
  %s6 = inlined_call_operand.vmem [shape: f32[1,128], index: 6, kind: input, shape index: {}]
  %s7 = inlined_call_operand.vmem [shape: f32[8,128], index: 7, kind: output, shape index: {}]
  %s8 = sld [smem:[#allocation0]]
  $region54: #{edge_placement_forward.1} parent=0
    _
  %s10 = ssub.s32 1, %s8
  %s11 = scalar_select 0, %s10, %s8
  $region1: #{edge_placement_forward.1} parent=0
    #allocation2 [shape = 'u8[4096]{0}', space=vmem, size = 0x1000, scoped, tag = 'input window, operand 0, single buffered']
    #allocation3 [shape = 's32[1]{0}', space=sflag, size = 0x4, scoped, tag = 'scoped memory for edge_placement_forward.1']
    #allocation4 [shape = 'u8[32768]{0}', space=vmem, size = 0x8000, scoped, tag = 'input window, operand 1, single buffered']
    #allocation5 [shape = 's32[1]{0}', space=sflag, size = 0x4, scoped, tag = 'scoped memory for edge_placement_forward.1']
    #allocation6 [shape = 'u8[262144]{0}', space=vmem, size = 0x40000, scoped, tag = 'input window, operand 3, single buffered']
    #allocation7 [shape = 'u8[131072]{0}', space=vmem, size = 0x20000, scoped, tag = 'input window, operand 5, single buffered']
    #allocation8 [shape = 's32[1]{0}', space=sflag, size = 0x4, scoped, tag = 'scoped memory for edge_placement_forward.1']
    %12 = vsyncpa [#allocation3], 0
    %13 = vsyncpa [#allocation5], 0
    %14 = vsyncpa [#allocation8], 0
    // Predicated region
    $region2: #{edge_placement_forward.1} parent=1 // pred_check
      _
    $region3: #{edge_placement_forward.1} parent=1 // pred_check_branch
      %16 = sbr.rel (0) target = $region5
    $region4: #{edge_placement_forward.1} parent=1 // pred_region
      %s18 = ssub.s32 128, 128
      %19 = vsyncadd [#allocation3], %s18
      %s21 = sshll.u32 [#allocation2], 4
      %s22 = int_to_ptr.vmem [resolvable:$true] %s21
      %24 = dma.hbm_to_vmem [thread:$0]  %s0, 128, %s22, [#allocation3]
    $region5: #{edge_placement_forward.1} parent=1 // pred_fallthru
      _
    // Predicated region
    $region6: #{edge_placement_forward.1} parent=1 // pred_check
      _
    $region7: #{edge_placement_forward.1} parent=1 // pred_check_branch
      %26 = sbr.rel (0) target = $region9
    $region8: #{edge_placement_forward.1} parent=1 // pred_region
      %s28 = ssub.s32 1024, 1024
      %29 = vsyncadd [#allocation5], %s28
      %s30 = sshll.u32 [#allocation4], 4
      %s31 = int_to_ptr.vmem [resolvable:$true] %s30
      %36 = dma.hbm_to_vmem [thread:$0]  %s1, 1024, %s31, [#allocation5], 256, 256, 16
    $region9: #{edge_placement_forward.1} parent=1 // pred_fallthru
      _
    // Predicated region
    $region10: #{edge_placement_forward.1} parent=1 // pred_check
      _
    $region11: #{edge_placement_forward.1} parent=1 // pred_check_branch
      %38 = sbr.rel (0) target = $region13
    $region12: #{edge_placement_forward.1} parent=1 // pred_region
      _
    $region13: #{edge_placement_forward.1} parent=1 // pred_fallthru
      _
    // Predicated region
    $region14: #{edge_placement_forward.1} parent=1 // pred_check
      _
    $region15: #{edge_placement_forward.1} parent=1 // pred_check_branch
      %40 = sbr.rel (0) target = $region17
    $region16: #{edge_placement_forward.1} parent=1 // pred_region
      %s42 = ssub.s32 8192, 8192
      %43 = vsyncadd [#allocation5], %s42
      %s44 = sshll.u32 [#allocation6], 4
      %s45 = int_to_ptr.vmem [resolvable:$true] %s44
      %50 = dma.hbm_to_vmem [thread:$0]  %s3, 8192, %s45, [#allocation5], 256, 256, 16
    $region17: #{edge_placement_forward.1} parent=1 // pred_fallthru
      _
    // Predicated region
    $region18: #{edge_placement_forward.1} parent=1 // pred_check
      _
    $region19: #{edge_placement_forward.1} parent=1 // pred_check_branch
      %52 = sbr.rel (0) target = $region21
    $region20: #{edge_placement_forward.1} parent=1 // pred_region
      _
    $region21: #{edge_placement_forward.1} parent=1 // pred_fallthru
      _
    // Predicated region
    $region22: #{edge_placement_forward.1} parent=1 // pred_check
      _
    $region23: #{edge_placement_forward.1} parent=1 // pred_check_branch
      %54 = sbr.rel (0) target = $region25
    $region24: #{edge_placement_forward.1} parent=1 // pred_region
      %s56 = ssub.s32 4096, 4096
      %57 = vsyncadd [#allocation8], %s56
      %s58 = sshll.u32 [#allocation7], 4
      %s59 = int_to_ptr.vmem [resolvable:$true] %s58
      %64 = dma.hbm_to_vmem [thread:$0]  %s5, 4096, %s59, [#allocation8], 128, 128, 8
    $region25: #{edge_placement_forward.1} parent=1 // pred_fallthru
      _
    // Predicated region
    $region26: #{edge_placement_forward.1} parent=1 // pred_check
      _
    $region27: #{edge_placement_forward.1} parent=1 // pred_check_branch
      %66 = sbr.rel (0) target = $region29
    $region28: #{edge_placement_forward.1} parent=1 // pred_region
      _
    $region29: #{edge_placement_forward.1} parent=1 // pred_fallthru
      _
    // Predicated region
    $region30: #{edge_placement_forward.1} parent=1 // pred_check
      _
    $region31: #{edge_placement_forward.1} parent=1 // pred_check_branch
      %68 = sbr.rel (0) target = $region33
    $region32: #{edge_placement_forward.1} parent=1 // pred_region
      %69 = dma.done [#allocation3], 128
    $region33: #{edge_placement_forward.1} parent=1 // pred_fallthru
      _
    // Predicated region
    $region34: #{edge_placement_forward.1} parent=1 // pred_check
      _
    $region35: #{edge_placement_forward.1} parent=1 // pred_check_branch
      %71 = sbr.rel (0) target = $region37
    $region36: #{edge_placement_forward.1} parent=1 // pred_region
      %72 = dma.done [#allocation5], 1024
    $region37: #{edge_placement_forward.1} parent=1 // pred_fallthru
      _
    // Predicated region
    $region38: #{edge_placement_forward.1} parent=1 // pred_check
      _
    $region39: #{edge_placement_forward.1} parent=1 // pred_check_branch
      %74 = sbr.rel (0) target = $region41
    $region40: #{edge_placement_forward.1} parent=1 // pred_region
      %75 = dma.done [#allocation5], 8192
    $region41: #{edge_placement_forward.1} parent=1 // pred_fallthru
      _
    // Predicated region
    $region42: #{edge_placement_forward.1} parent=1 // pred_check
      _
    $region43: #{edge_placement_forward.1} parent=1 // pred_check_branch
      %77 = sbr.rel (0) target = $region45
    $region44: #{edge_placement_forward.1} parent=1 // pred_region
      %78 = dma.done [#allocation8], 4096
    $region45: #{edge_placement_forward.1} parent=1 // pred_fallthru
      _
    %v79 = vld [vmem:[#allocation2] sm:$0xff]
    %v80 = vld [vmem:[#allocation4] sm:$0xff]
    %v81 = vld [vmem:[#allocation4 + $0x8] sm:$0xff]
    %v82 = vld [vmem:[#allocation4 + $0x10] sm:$0xff]
    %v83 = vld [vmem:[#allocation4 + $0x18] sm:$0xff]
    %v84 = vld [vmem:[#allocation4 + $0x20] sm:$0xff]
    %v85 = vld [vmem:[#allocation4 + $0x28] sm:$0xff]
    %v86 = vld [vmem:[#allocation4 + $0x30] sm:$0xff]
    %v87 = vld [vmem:[#allocation4 + $0x38] sm:$0xff]
    %v88 = vld [vmem:[%s2] sm:$0x3]
    %v90 = vlaneseq
    %v91 = vshrl.u32 %v90, 7
    %v92 = vsub.s32 0, %v91
    %v93 = vrot.slane %v88, %v92
    %v94 = vlaneseq
    %v95 = vshrl.u32 %v94, 7
    %v96 = vsub.s32 1, %v95
    %v97 = vrot.slane %v88, %v96
    %vm100 = vcmask 261120
    %v102 = vsel %vm100, %v79, 0
    %104 = vmatprep.subr.mxu0 %v81
    %105 = vmatpush1.msra.mxu0 %v80
    %106 = vmatprep.subr.mxu0 %v83
    %107 = vmatpush1.msra.mxu0 %v82
    %108 = vmatprep.subr.mxu0 %v85
    %109 = vmatpush1.msra.mxu0 %v84
    %110 = vmatprep.subr.mxu0 %v87
    %111 = vmatpush1.msra.mxu0 %v86
    %112 = vmatprep.subr.mxu0 0.0
    %113 = vmatpush1.msra.mxu0 0.0
    %114 = vmatprep.subr.mxu0 0.0
    %115 = vmatpush1.msra.mxu0 0.0
    %116 = vmatprep.subr.mxu0 0.0
    %117 = vmatpush1.msra.mxu0 0.0
    %118 = vmatprep.subr.mxu0 0.0
    %119 = vmatpush1.msra.mxu0 0.0
    %120 = vmatprep.subr.mxu0 0.0
    %121 = vmatpush1.msra.mxu0 0.0
    %122 = vmatprep.subr.mxu0 0.0
    %123 = vmatpush1.msra.mxu0 0.0
    %124 = vmatprep.subr.mxu0 0.0
    %125 = vmatpush1.msra.mxu0 0.0
    %126 = vmatprep.subr.mxu0 0.0
    %127 = vmatpush1.msra.mxu0 0.0
    %128 = vmatprep.subr.mxu0 0.0
    %129 = vmatpush1.msra.mxu0 0.0
    %130 = vmatprep.subr.mxu0 0.0
    %131 = vmatpush1.msra.mxu0 0.0
    %132 = vmatprep.subr.mxu0 0.0
    %133 = vmatpush1.msra.mxu0 0.0
    %134 = vmatprep.subr.mxu0 0.0
    %135 = vmatpush1.msra.mxu0 0.0
    %136 = vmatprep.subr.mxu0 0.0
    %137 = vmatpush1.msra.mxu0 0.0
    %138 = vmatprep.subr.mxu0 0.0
    %139 = vmatpush1.msra.mxu0 0.0
    %140 = vmatprep.subr.mxu0 0.0
    %141 = vmatpush1.msra.mxu0 0.0
    %142 = vmatprep.subr.mxu0 0.0
    %143 = vmatpush1.msra.mxu0 0.0
    %144 = vmatprep.subr.mxu0 0.0
    %145 = vmatpush1.msra.mxu0 0.0
    %146 = vmatprep.subr.mxu0 0.0
    %147 = vmatpush1.msra.mxu0 0.0
    %148 = vmatprep.subr.mxu0 0.0
    %149 = vmatpush1.msra.mxu0 0.0
    %150 = vmatprep.subr.mxu0 0.0
    %151 = vmatpush1.msra.mxu0 0.0
    %152 = vmatprep.subr.mxu0 0.0
    %153 = vmatpush1.msra.mxu0 0.0
    %154 = vmatprep.subr.mxu0 0.0
    %155 = vmatpush1.msra.mxu0 0.0
    %156 = vmatprep.subr.mxu0 0.0
    %157 = vmatpush1.msra.mxu0 0.0
    %158 = vmatprep.subr.mxu0 0.0
    %159 = vmatpush1.msra.mxu0 0.0
    %160 = vmatprep.subr.mxu0 0.0
    %161 = vmatpush1.msra.mxu0 0.0
    %162 = vmatprep.subr.mxu0 0.0
    %163 = vmatpush1.msra.mxu0 0.0
    %164 = vmatprep.subr.mxu0 0.0
    %165 = vmatpush1.msra.mxu0 0.0
    %166 = vmatprep.subr.mxu0 0.0
    %167 = vmatpush1.msra.mxu0 0.0
    %168 = vmatprep.mubr.f32.mxu0 0.0
    %169 = vmatmul.mubr.f32.gmra.mrb[0].mxu0 %v102
    %v170 = vpop.f32.mrb[0].mxu0
    %v171 = vadd.f32 %v93, %v170
    %v172 = vpop.f32.mrb[0].mxu0
    %v173 = vadd.f32 %v97, %v172
    %174 = vdwg.mxu0
    %v175 = vmax.f32 %v171, 0.0
    %v176 = vmax.f32 %v173, 0.0
    %v177 = vld [vmem:[#allocation6] sm:$0xff]
    %v178 = vld [vmem:[#allocation6 + $0x8] sm:$0xff]
    %v179 = vld [vmem:[#allocation6 + $0x10] sm:$0xff]
    %v180 = vld [vmem:[#allocation6 + $0x18] sm:$0xff]
    %v181 = vld [vmem:[#allocation6 + $0x20] sm:$0xff]
    %v182 = vld [vmem:[#allocation6 + $0x28] sm:$0xff]
    %v183 = vld [vmem:[#allocation6 + $0x30] sm:$0xff]
    %v184 = vld [vmem:[#allocation6 + $0x38] sm:$0xff]
    %v185 = vld [vmem:[#allocation6 + $0x40] sm:$0xff]
    %v186 = vld [vmem:[#allocation6 + $0x48] sm:$0xff]
    %v187 = vld [vmem:[#allocation6 + $0x50] sm:$0xff]
    %v188 = vld [vmem:[#allocation6 + $0x58] sm:$0xff]
    %v189 = vld [vmem:[#allocation6 + $0x60] sm:$0xff]
    %v190 = vld [vmem:[#allocation6 + $0x68] sm:$0xff]
    %v191 = vld [vmem:[#allocation6 + $0x70] sm:$0xff]
    %v192 = vld [vmem:[#allocation6 + $0x78] sm:$0xff]
    %v193 = vld [vmem:[#allocation6 + $0x80] sm:$0xff]
    %v194 = vld [vmem:[#allocation6 + $0x88] sm:$0xff]
    %v195 = vld [vmem:[#allocation6 + $0x90] sm:$0xff]
    %v196 = vld [vmem:[#allocation6 + $0x98] sm:$0xff]
    %v197 = vld [vmem:[#allocation6 + $0xa0] sm:$0xff]
    %v198 = vld [vmem:[#allocation6 + $0xa8] sm:$0xff]
    %v199 = vld [vmem:[#allocation6 + $0xb0] sm:$0xff]
    %v200 = vld [vmem:[#allocation6 + $0xb8] sm:$0xff]
    %v201 = vld [vmem:[#allocation6 + $0xc0] sm:$0xff]
    %v202 = vld [vmem:[#allocation6 + $0xc8] sm:$0xff]
    %v203 = vld [vmem:[#allocation6 + $0xd0] sm:$0xff]
    %v204 = vld [vmem:[#allocation6 + $0xd8] sm:$0xff]
    %v205 = vld [vmem:[#allocation6 + $0xe0] sm:$0xff]
    %v206 = vld [vmem:[#allocation6 + $0xe8] sm:$0xff]
    %v207 = vld [vmem:[#allocation6 + $0xf0] sm:$0xff]
    %v208 = vld [vmem:[#allocation6 + $0xf8] sm:$0xff]
    %v209 = vld [vmem:[#allocation6 + $0x100] sm:$0xff]
    %v210 = vld [vmem:[#allocation6 + $0x108] sm:$0xff]
    %v211 = vld [vmem:[#allocation6 + $0x110] sm:$0xff]
    %v212 = vld [vmem:[#allocation6 + $0x118] sm:$0xff]
    %v213 = vld [vmem:[#allocation6 + $0x120] sm:$0xff]
    %v214 = vld [vmem:[#allocation6 + $0x128] sm:$0xff]
    %v215 = vld [vmem:[#allocation6 + $0x130] sm:$0xff]
    %v216 = vld [vmem:[#allocation6 + $0x138] sm:$0xff]
    %v217 = vld [vmem:[#allocation6 + $0x140] sm:$0xff]
    %v218 = vld [vmem:[#allocation6 + $0x148] sm:$0xff]
    %v219 = vld [vmem:[#allocation6 + $0x150] sm:$0xff]
    %v220 = vld [vmem:[#allocation6 + $0x158] sm:$0xff]
    %v221 = vld [vmem:[#allocation6 + $0x160] sm:$0xff]
    %v222 = vld [vmem:[#allocation6 + $0x168] sm:$0xff]
    %v223 = vld [vmem:[#allocation6 + $0x170] sm:$0xff]
    %v224 = vld [vmem:[#allocation6 + $0x178] sm:$0xff]
    %v225 = vld [vmem:[#allocation6 + $0x180] sm:$0xff]
    %v226 = vld [vmem:[#allocation6 + $0x188] sm:$0xff]
    %v227 = vld [vmem:[#allocation6 + $0x190] sm:$0xff]
    %v228 = vld [vmem:[#allocation6 + $0x198] sm:$0xff]
    %v229 = vld [vmem:[#allocation6 + $0x1a0] sm:$0xff]
    %v230 = vld [vmem:[#allocation6 + $0x1a8] sm:$0xff]
    %v231 = vld [vmem:[#allocation6 + $0x1b0] sm:$0xff]
    %v232 = vld [vmem:[#allocation6 + $0x1b8] sm:$0xff]
    %v233 = vld [vmem:[#allocation6 + $0x1c0] sm:$0xff]
    %v234 = vld [vmem:[#allocation6 + $0x1c8] sm:$0xff]
    %v235 = vld [vmem:[#allocation6 + $0x1d0] sm:$0xff]
    %v236 = vld [vmem:[#allocation6 + $0x1d8] sm:$0xff]
    %v237 = vld [vmem:[#allocation6 + $0x1e0] sm:$0xff]
    %v238 = vld [vmem:[#allocation6 + $0x1e8] sm:$0xff]
    %v239 = vld [vmem:[#allocation6 + $0x1f0] sm:$0xff]
    %v240 = vld [vmem:[#allocation6 + $0x1f8] sm:$0xff]
    %v241 = vld [vmem:[%s4] sm:$0x3]
    %v243 = vlaneseq
    %v244 = vshrl.u32 %v243, 7
    %v245 = vsub.s32 0, %v244
    %v246 = vrot.slane %v241, %v245
    %v247 = vlaneseq
    %v248 = vshrl.u32 %v247, 7
    %v249 = vsub.s32 1, %v248
    %v250 = vrot.slane %v241, %v249
    %253 = vmatprep.subr.mxu0 %v178
    %254 = vmatpush1.msra.mxu0 %v177
    %255 = vmatprep.subr.mxu0 %v180
    %256 = vmatpush1.msra.mxu0 %v179
    %257 = vmatprep.subr.mxu0 %v182
    %258 = vmatpush1.msra.mxu0 %v181
    %259 = vmatprep.subr.mxu0 %v184
    %260 = vmatpush1.msra.mxu0 %v183
    %261 = vmatprep.subr.mxu0 %v186
    %262 = vmatpush1.msra.mxu0 %v185
    %263 = vmatprep.subr.mxu0 %v188
    %264 = vmatpush1.msra.mxu0 %v187
    %265 = vmatprep.subr.mxu0 %v190
    %266 = vmatpush1.msra.mxu0 %v189
    %267 = vmatprep.subr.mxu0 %v192
    %268 = vmatpush1.msra.mxu0 %v191
    %269 = vmatprep.subr.mxu0 %v194
    %270 = vmatpush1.msra.mxu0 %v193
    %271 = vmatprep.subr.mxu0 %v196
    %272 = vmatpush1.msra.mxu0 %v195
    %273 = vmatprep.subr.mxu0 %v198
    %274 = vmatpush1.msra.mxu0 %v197
    %275 = vmatprep.subr.mxu0 %v200
    %276 = vmatpush1.msra.mxu0 %v199
    %277 = vmatprep.subr.mxu0 %v202
    %278 = vmatpush1.msra.mxu0 %v201
    %279 = vmatprep.subr.mxu0 %v204
    %280 = vmatpush1.msra.mxu0 %v203
    %281 = vmatprep.subr.mxu0 %v206
    %282 = vmatpush1.msra.mxu0 %v205
    %283 = vmatprep.subr.mxu0 %v208
    %284 = vmatpush1.msra.mxu0 %v207
    %285 = vmatprep.subr.mxu0 %v210
    %286 = vmatpush1.msra.mxu0 %v209
    %287 = vmatprep.subr.mxu0 %v212
    %288 = vmatpush1.msra.mxu0 %v211
    %289 = vmatprep.subr.mxu0 %v214
    %290 = vmatpush1.msra.mxu0 %v213
    %291 = vmatprep.subr.mxu0 %v216
    %292 = vmatpush1.msra.mxu0 %v215
    %293 = vmatprep.subr.mxu0 %v218
    %294 = vmatpush1.msra.mxu0 %v217
    %295 = vmatprep.subr.mxu0 %v220
    %296 = vmatpush1.msra.mxu0 %v219
    %297 = vmatprep.subr.mxu0 %v222
    %298 = vmatpush1.msra.mxu0 %v221
    %299 = vmatprep.subr.mxu0 %v224
    %300 = vmatpush1.msra.mxu0 %v223
    %301 = vmatprep.subr.mxu0 %v226
    %302 = vmatpush1.msra.mxu0 %v225
    %303 = vmatprep.subr.mxu0 %v228
    %304 = vmatpush1.msra.mxu0 %v227
    %305 = vmatprep.subr.mxu0 %v230
    %306 = vmatpush1.msra.mxu0 %v229
    %307 = vmatprep.subr.mxu0 %v232
    %308 = vmatpush1.msra.mxu0 %v231
    %309 = vmatprep.subr.mxu0 %v234
    %310 = vmatpush1.msra.mxu0 %v233
    %311 = vmatprep.subr.mxu0 %v236
    %312 = vmatpush1.msra.mxu0 %v235
    %313 = vmatprep.subr.mxu0 %v238
    %314 = vmatpush1.msra.mxu0 %v237
    %315 = vmatprep.subr.mxu0 %v240
    %316 = vmatpush1.msra.mxu0 %v239
    %317 = vmatprep.mubr.f32.mxu0 %v176
    %318 = vmatmul.mubr.f32.gmra.mrb[0].mxu0 %v175
    %v319 = vpop.f32.mrb[0].mxu0
    %v320 = vadd.f32 %v246, %v319
    %v321 = vpop.f32.mrb[0].mxu0
    %v322 = vadd.f32 %v250, %v321
    %323 = vdwg.mxu0
    %v324 = vmax.f32 %v320, 0.0
    %v325 = vmax.f32 %v322, 0.0
    %v326 = vld [vmem:[#allocation7] sm:$0xff]
    %v327 = vld [vmem:[#allocation7 + $0x8] sm:$0xff]
    %v328 = vld [vmem:[#allocation7 + $0x10] sm:$0xff]
    %v329 = vld [vmem:[#allocation7 + $0x18] sm:$0xff]
    %v330 = vld [vmem:[#allocation7 + $0x20] sm:$0xff]
    %v331 = vld [vmem:[#allocation7 + $0x28] sm:$0xff]
    %v332 = vld [vmem:[#allocation7 + $0x30] sm:$0xff]
    %v333 = vld [vmem:[#allocation7 + $0x38] sm:$0xff]
    %v334 = vld [vmem:[#allocation7 + $0x40] sm:$0xff]
    %v335 = vld [vmem:[#allocation7 + $0x48] sm:$0xff]
    %v336 = vld [vmem:[#allocation7 + $0x50] sm:$0xff]
    %v337 = vld [vmem:[#allocation7 + $0x58] sm:$0xff]
    %v338 = vld [vmem:[#allocation7 + $0x60] sm:$0xff]
    %v339 = vld [vmem:[#allocation7 + $0x68] sm:$0xff]
    %v340 = vld [vmem:[#allocation7 + $0x70] sm:$0xff]
    %v341 = vld [vmem:[#allocation7 + $0x78] sm:$0xff]
    %v342 = vld [vmem:[#allocation7 + $0x80] sm:$0xff]
    %v343 = vld [vmem:[#allocation7 + $0x88] sm:$0xff]
    %v344 = vld [vmem:[#allocation7 + $0x90] sm:$0xff]
    %v345 = vld [vmem:[#allocation7 + $0x98] sm:$0xff]
    %v346 = vld [vmem:[#allocation7 + $0xa0] sm:$0xff]
    %v347 = vld [vmem:[#allocation7 + $0xa8] sm:$0xff]
    %v348 = vld [vmem:[#allocation7 + $0xb0] sm:$0xff]
    %v349 = vld [vmem:[#allocation7 + $0xb8] sm:$0xff]
    %v350 = vld [vmem:[#allocation7 + $0xc0] sm:$0xff]
    %v351 = vld [vmem:[#allocation7 + $0xc8] sm:$0xff]
    %v352 = vld [vmem:[#allocation7 + $0xd0] sm:$0xff]
    %v353 = vld [vmem:[#allocation7 + $0xd8] sm:$0xff]
    %v354 = vld [vmem:[#allocation7 + $0xe0] sm:$0xff]
    %v355 = vld [vmem:[#allocation7 + $0xe8] sm:$0xff]
    %v356 = vld [vmem:[#allocation7 + $0xf0] sm:$0xff]
    %v357 = vld [vmem:[#allocation7 + $0xf8] sm:$0xff]
    %v358 = vld [vmem:[%s6] sm:$0x1]
    %v360 = vlaneseq
    %v361 = vshrl.u32 %v360, 7
    %v362 = vsub.s32 0, %v361
    %v363 = vrot.slane %v358, %v362
    %365 = vmatprep.subr.mxu0 0.0
    %366 = vmatpush1.msra.mxu0 %v326
    %367 = vmatprep.subr.mxu0 0.0
    %368 = vmatpush1.msra.mxu0 %v327
    %369 = vmatprep.subr.mxu0 0.0
    %370 = vmatpush1.msra.mxu0 %v328
    %371 = vmatprep.subr.mxu0 0.0
    %372 = vmatpush1.msra.mxu0 %v329
    %373 = vmatprep.subr.mxu0 0.0
    %374 = vmatpush1.msra.mxu0 %v330
    %375 = vmatprep.subr.mxu0 0.0
    %376 = vmatpush1.msra.mxu0 %v331
    %377 = vmatprep.subr.mxu0 0.0
    %378 = vmatpush1.msra.mxu0 %v332
    %379 = vmatprep.subr.mxu0 0.0
    %380 = vmatpush1.msra.mxu0 %v333
    %381 = vmatprep.subr.mxu0 0.0
    %382 = vmatpush1.msra.mxu0 %v334
    %383 = vmatprep.subr.mxu0 0.0
    %384 = vmatpush1.msra.mxu0 %v335
    %385 = vmatprep.subr.mxu0 0.0
    %386 = vmatpush1.msra.mxu0 %v336
    %387 = vmatprep.subr.mxu0 0.0
    %388 = vmatpush1.msra.mxu0 %v337
    %389 = vmatprep.subr.mxu0 0.0
    %390 = vmatpush1.msra.mxu0 %v338
    %391 = vmatprep.subr.mxu0 0.0
    %392 = vmatpush1.msra.mxu0 %v339
    %393 = vmatprep.subr.mxu0 0.0
    %394 = vmatpush1.msra.mxu0 %v340
    %395 = vmatprep.subr.mxu0 0.0
    %396 = vmatpush1.msra.mxu0 %v341
    %397 = vmatprep.subr.mxu0 0.0
    %398 = vmatpush1.msra.mxu0 %v342
    %399 = vmatprep.subr.mxu0 0.0
    %400 = vmatpush1.msra.mxu0 %v343
    %401 = vmatprep.subr.mxu0 0.0
    %402 = vmatpush1.msra.mxu0 %v344
    %403 = vmatprep.subr.mxu0 0.0
    %404 = vmatpush1.msra.mxu0 %v345
    %405 = vmatprep.subr.mxu0 0.0
    %406 = vmatpush1.msra.mxu0 %v346
    %407 = vmatprep.subr.mxu0 0.0
    %408 = vmatpush1.msra.mxu0 %v347
    %409 = vmatprep.subr.mxu0 0.0
    %410 = vmatpush1.msra.mxu0 %v348
    %411 = vmatprep.subr.mxu0 0.0
    %412 = vmatpush1.msra.mxu0 %v349
    %413 = vmatprep.subr.mxu0 0.0
    %414 = vmatpush1.msra.mxu0 %v350
    %415 = vmatprep.subr.mxu0 0.0
    %416 = vmatpush1.msra.mxu0 %v351
    %417 = vmatprep.subr.mxu0 0.0
    %418 = vmatpush1.msra.mxu0 %v352
    %419 = vmatprep.subr.mxu0 0.0
    %420 = vmatpush1.msra.mxu0 %v353
    %421 = vmatprep.subr.mxu0 0.0
    %422 = vmatpush1.msra.mxu0 %v354
    %423 = vmatprep.subr.mxu0 0.0
    %424 = vmatpush1.msra.mxu0 %v355
    %425 = vmatprep.subr.mxu0 0.0
    %426 = vmatpush1.msra.mxu0 %v356
    %427 = vmatprep.subr.mxu0 0.0
    %428 = vmatpush1.msra.mxu0 %v357
    %429 = vmatprep.mubr.f32.mxu0 %v325
    %430 = vmatmul.mubr.f32.gmra.mrb[0].mxu0 %v324
    %v431 = vpop.f32.mrb[0].mxu0
    %v432 = vadd.f32 %v363, %v431
    %v433 = vpop.f32.mrb[0].mxu0
    %434 = vdwg.mxu0
    %435 = vst [vmem:[%s7] sm:$0xff] %v432
    // Predicated region
    $region46: #{edge_placement_forward.1} parent=1 // pred_check
      _
    $region47: #{edge_placement_forward.1} parent=1 // pred_check_branch
      %437 = sbr.rel (0) target = $region49
    $region48: #{edge_placement_forward.1} parent=1 // pred_region
      _
    $region49: #{edge_placement_forward.1} parent=1 // pred_fallthru
      _
    // Predicated region
    $region50: #{edge_placement_forward.1} parent=1 // pred_check
      _
    $region51: #{edge_placement_forward.1} parent=1 // pred_check_branch
      %439 = sbr.rel (0) target = $region53
    $region52: #{edge_placement_forward.1} parent=1 // pred_region
      _
    $region53: #{edge_placement_forward.1} parent=1 // pred_fallthru
      _
    %440 = vsyncpa [#allocation3], 1
    %441 = vsyncpa [#allocation5], 1
    %442 = vsyncpa [#allocation8], 1

</llo_original>
